<compile_context>
chip_gen: v5e
topology: v5e:2x2
jax: 0.10.0
libtpu: 0.0.40
codegen_flags: <defaults>
</compile_context>

<pallas_src>
import numpy as np
import jax
import jax.numpy as jnp
from jax import lax
from jax.experimental import pallas as pl
from jax.experimental.pallas import tpu as pltpu

# ---- problem sizes (small, consistent with the module) ----
N, CIN, PLANES = 2, 4, 8
H = W = 16
HW = H * W
H2 = (H - 1) // 3 + 1            # conv_l2: 1x1, stride 3, no pad        -> 6
W2 = (W - 1) // 3 + 1
H3 = (H2 + 2 - 3) // 3 + 1       # conv_l3: 3x3, stride 3, reflect pad 1 -> 2
W3 = (W2 + 2 - 3) // 3 + 1
NPOS = H3 * W3                   # conv_l3 output positions (4)
NTAP = 9                         # 3x3 taps
FEAT1 = NTAP * CIN               # 36  conv_l1 im2col features
FEATG = FEAT1 * NTAP             # 324 tap-expanded features (gather path)
CEXP = PLANES * NTAP             # 72  tap-expanded channels
NCOLS = N * HW                   # 512 main-path columns (batch fused in lanes)
GCOLS = N * NPOS                 # 8   gather-path columns

# PReLU slopes (each ConvLayer's nn.PReLU() holds a single learnable scalar)
A1, A2, A3, A4 = 0.25, 0.20, 0.15, 0.10

# ---- packed small-slab row layout (all offsets are multiples of 8) ----
_S_W1M = 0      # (8, 36)
_S_W3M = 8      # (8, 72)
_S_W4T = 16     # (8, 8)   (ci, co)
_S_W5M = 24     # (8, 8)   (co, ci)
_S_B1B = 32     # (72, 1)  b1 tap-expanded
_S_B2B = 104    # (72, 1)  b2 tap-expanded
_S_B1 = 176     # (8, 1)
_S_B3 = 184     # (8, 1)
_S_B5 = 192     # (8, 1)
_S_B4 = 200     # (1, 8)
S_ROWS, S_COLS = 208, CEXP       # (208, 72)
W_ROWS, W_COLS = 2 * CEXP, FEATG  # (144, 324)


def _prelu(x, a):
    return jnp.where(x >= 0, x, a * x)


def _build_gather_index():
    """(NTAP*NPOS,) int32 (tap-major, pos-minor): pixel index into the HxW
    conv_l1 output read by conv_l3's im2col at (tap, output position), with
    conv_l2's stride-3 subsample and conv_l3's ReflectionPad2d(1) folded in.
    Assumes H2, W2 >= 2 (holds here: 6x6)."""
    def refl(i, n):
        if i < 0:
            return -i
        if i >= n:
            return 2 * (n - 1) - i
        return i

    idx = np.zeros((NTAP, NPOS), np.int32)
    for ky in range(3):
        for kx in range(3):
            tap = ky * 3 + kx
            for oy in range(H3):
                for ox in range(W3):
                    pos = oy * W3 + ox
                    r2 = refl(3 * oy + ky - 1, H2)   # row in 6x6 subsample grid
                    c2 = refl(3 * ox + kx - 1, W2)   # col in 6x6 subsample grid
                    idx[tap, pos] = (3 * r2) * W + (3 * c2)
    return idx.reshape(-1)


_GATHER_IDX = _build_gather_index()


# --------------------------------------------------------------------------
# Fused kernel: conv_l1 + full channel-attention branch + gating, no grid.
# --------------------------------------------------------------------------
def cam_fused_kernel(p_ref, pe_ref, w_ref, s_ref, y_ref):
    """p_ref : (36, 512)  conv_l1 im2col slab, columns n*HW + pixel
       pe_ref: (324, 8)   tap-expanded gather slab, columns n*NPOS + pos
       w_ref : (144, 324) [W1blk (72,324) ; W2blk (72,72) zero-padded]
       s_ref : (208, 72)  packed small weights / biases (see _S_* offsets)
       y_ref : (2, 8, 256) gated conv_l1 output, channel-first"""
    f32 = jnp.float32

    # Unpack weight slabs: static 8-aligned row slices, all start at lane 0.
    w1m = s_ref[_S_W1M:_S_W1M + PLANES, 0:FEAT1]            # (8, 36)
    w3m = s_ref[_S_W3M:_S_W3M + PLANES, 0:CEXP]             # (8, 72)
    w4t = s_ref[_S_W4T:_S_W4T + PLANES, 0:PLANES]           # (8, 8)  (ci, co)
    w5m = s_ref[_S_W5M:_S_W5M + PLANES, 0:PLANES]           # (8, 8)  (co, ci)
    b1b = s_ref[_S_B1B:_S_B1B + CEXP, 0:1]                  # (72, 1)
    b2b = s_ref[_S_B2B:_S_B2B + CEXP, 0:1]                  # (72, 1)
    b1c = s_ref[_S_B1:_S_B1 + PLANES, 0:1]                  # (8, 1)
    b3c = s_ref[_S_B3:_S_B3 + PLANES, 0:1]                  # (8, 1)
    b5c = s_ref[_S_B5:_S_B5 + PLANES, 0:1]                  # (8, 1)
    b4r = s_ref[_S_B4:_S_B4 + 1, 0:PLANES]                  # (1, 8)
    w1blk = w_ref[0:CEXP, :]                                # (72, 324)
    w2blk = w_ref[CEXP:2 * CEXP, 0:CEXP]                    # (72, 72)

    # Main path: conv_l1 over both samples at once -> lane-dense (8, 512).
    out = jnp.dot(w1m, p_ref[...], preferred_element_type=f32)
    out = _prelu(out + b1c, A1)

    # Attention branch in tap-expanded channel layout (no in-kernel gather,
    # reshape or transpose): conv_l1, conv_l2 (block-diag by tap), conv_l3.
    g1 = jnp.dot(w1blk, pe_ref[...], preferred_element_type=f32)
    g1 = _prelu(g1 + b1b, A1)                                        # (72, 8)
    g2 = _prelu(jnp.dot(w2blk, g1, preferred_element_type=f32) + b2b, A2)
    c3 = _prelu(jnp.dot(w3m, g2, preferred_element_type=f32) + b3c, A3)  # (8,8)

    # Per-sample: spatial mean, conv_l4/l5 on VPU/XLU, sigmoid gate, store.
    for n in range(N):                                       # static, N == 2
        ca = jnp.mean(c3[:, n * NPOS:(n + 1) * NPOS], axis=1, keepdims=True)
        c4 = jnp.sum(w4t * ca, axis=0, keepdims=True) + b4r          # (1, 8)
        c4 = _prelu(c4, A4)
        c5 = jnp.sum(w5m * c4, axis=1, keepdims=True) + b5c          # (8, 1)
        gate = jax.nn.sigmoid(c5)                                    # (8, 1)
        y_ref[n] = out[:, n * HW:(n + 1) * HW] * gate                # (8, 256)


# --------------------------------------------------------------------------
# Wrapper
# --------------------------------------------------------------------------
def cam_block(x_nchw, params):
    """CAMBlock forward.  x_nchw: (N, CIN, H, W); params in PyTorch layouts."""
    (w1, b1, w2, b2, w3, b3, w4, b4, w5, b5) = params
    x = x_nchw.astype(jnp.float32)

    # conv_l1 im2col (reflect pad 1, 3x3); feature rows ordered tap1*CIN+cin.
    xpad = jnp.pad(x, ((0, 0), (0, 0), (1, 1), (1, 1)), mode="reflect")
    taps = [xpad[:, :, ky:ky + H, kx:kx + W]
            for ky in range(3) for kx in range(3)]           # 9 x (N,CIN,H,W)
    p = jnp.stack(taps, axis=1).reshape(N, FEAT1, HW)        # (N, 36, 256)
    p_all = jnp.transpose(p, (1, 0, 2)).reshape(FEAT1, NCOLS)   # (36, 512)

    # Gather path: select the 36 conv_l1 pixels that conv_l2(stride 3) +
    # conv_l3(reflect pad, 3x3, stride 3) read, then tap-expand the feature
    # axis so the attention branch needs no in-kernel reshape at all.
    gi = jnp.asarray(_GATHER_IDX)                            # (36,) tap*4+pos
    pg = p[:, :, gi]                                         # (N, 36, 36)
    pe = pg.reshape(N, FEAT1, NTAP, NPOS).reshape(N, FEATG, NPOS)
    pe_all = jnp.transpose(pe, (1, 0, 2)).reshape(FEATG, GCOLS)  # (324, 8)

    # Weights in the kernel's channel-first layouts (tiny, wrapper-side).
    w1m = jnp.transpose(w1, (0, 2, 3, 1)).reshape(PLANES, FEAT1)   # (8, 36)
    w2m = w2.reshape(PLANES, PLANES)
    w3m = w3.reshape(PLANES, CEXP)                                 # (8, 72)
    w4t = w4.reshape(PLANES, PLANES).T                             # (ci, co)
    w5m = w5.reshape(PLANES, PLANES)                               # (co, ci)
    eye9 = jnp.eye(NTAP, dtype=jnp.float32)
    # Block-diagonal-by-tap expansions: rows (c, tap), cols (feat, tap).
    w1blk = (w1m[:, None, :, None] * eye9[None, :, None, :]).reshape(CEXP, FEATG)
    w2blk = (w2m[:, None, :, None] * eye9[None, :, None, :]).reshape(CEXP, CEXP)

    wslab = jnp.zeros((W_ROWS, W_COLS), jnp.float32)
    wslab = wslab.at[0:CEXP, :].set(w1blk)
    wslab = wslab.at[CEXP:2 * CEXP, 0:CEXP].set(w2blk)

    sslab = jnp.zeros((S_ROWS, S_COLS), jnp.float32)
    sslab = sslab.at[_S_W1M:_S_W1M + PLANES, 0:FEAT1].set(w1m)
    sslab = sslab.at[_S_W3M:_S_W3M + PLANES, 0:CEXP].set(w3m)
    sslab = sslab.at[_S_W4T:_S_W4T + PLANES, 0:PLANES].set(w4t)
    sslab = sslab.at[_S_W5M:_S_W5M + PLANES, 0:PLANES].set(w5m)
    sslab = sslab.at[_S_B1B:_S_B1B + CEXP, 0:1].set(
        jnp.repeat(b1, NTAP).reshape(CEXP, 1))
    sslab = sslab.at[_S_B2B:_S_B2B + CEXP, 0:1].set(
        jnp.repeat(b2, NTAP).reshape(CEXP, 1))
    sslab = sslab.at[_S_B1:_S_B1 + PLANES, 0:1].set(b1.reshape(PLANES, 1))
    sslab = sslab.at[_S_B3:_S_B3 + PLANES, 0:1].set(b3.reshape(PLANES, 1))
    sslab = sslab.at[_S_B5:_S_B5 + PLANES, 0:1].set(b5.reshape(PLANES, 1))
    sslab = sslab.at[_S_B4:_S_B4 + 1, 0:PLANES].set(b4.reshape(1, PLANES))

    flops = (2 * (PLANES * FEAT1 * NCOLS + CEXP * FEATG * GCOLS
                  + CEXP * CEXP * GCOLS + PLANES * CEXP * GCOLS
                  + 2 * N * PLANES * PLANES)
             + 6 * PLANES * NCOLS)
    byt = 4 * (FEAT1 * NCOLS + FEATG * GCOLS + W_ROWS * W_COLS
               + S_ROWS * S_COLS + N * PLANES * HW)

    vmem = pl.BlockSpec(memory_space=pltpu.MemorySpace.VMEM)
    y = pl.pallas_call(
        cam_fused_kernel,
        out_shape=jax.ShapeDtypeStruct((N, PLANES, HW), jnp.float32),
        in_specs=[vmem, vmem, vmem, vmem],
        out_specs=vmem,
        cost_estimate=pl.CostEstimate(flops=flops,
                                      transcendentals=N * PLANES,
                                      bytes_accessed=byt),
    )(p_all, pe_all, wslab, sslab)

    return y.reshape(N, PLANES, H, W)                        # free reshape


# --------------------------------------------------------------------------
# Pure-JAX reference (lax convs, PyTorch NCHW/OIHW layouts) for correctness
# --------------------------------------------------------------------------
def ref_cam_block(x_nchw, params):
    (w1, b1, w2, b2, w3, b3, w4, b4, w5, b5) = params
    x = x_nchw.astype(jnp.float32)

    def conv(v, w, b, stride, pad):
        if pad:
            v = jnp.pad(v, ((0, 0), (0, 0), (pad, pad), (pad, pad)),
                        mode="reflect")
        y = lax.conv_general_dilated(
            v, w, (stride, stride), "VALID",
            dimension_numbers=("NCHW", "OIHW", "NCHW"))
        return y + b.reshape(1, -1, 1, 1)

    out = _prelu(conv(x, w1, b1, 1, 1), A1)
    ca = _prelu(conv(out, w2, b2, 3, 0), A2)
    ca = _prelu(conv(ca, w3, b3, 3, 1), A3)
    ca = jnp.mean(ca, axis=(2, 3), keepdims=True)
    ca = _prelu(conv(ca, w4, b4, 1, 0), A4)
    ca = conv(ca, w5, b5, 1, 0)
    return jax.nn.sigmoid(ca) * out


def init_params(key):
    ks = jax.random.split(key, 10)
    w1 = jax.random.normal(ks[0], (PLANES, CIN, 3, 3), jnp.float32) * 0.2
    b1 = jax.random.normal(ks[1], (PLANES,), jnp.float32) * 0.1
    w2 = jax.random.normal(ks[2], (PLANES, PLANES, 1, 1), jnp.float32) * 0.2
    b2 = jax.random.normal(ks[3], (PLANES,), jnp.float32) * 0.1
    w3 = jax.random.normal(ks[4], (PLANES, PLANES, 3, 3), jnp.float32) * 0.2
    b3 = jax.random.normal(ks[5], (PLANES,), jnp.float32) * 0.1
    w4 = jax.random.normal(ks[6], (PLANES, PLANES, 1, 1), jnp.float32) * 0.2
    b4 = jax.random.normal(ks[7], (PLANES,), jnp.float32) * 0.1
    w5 = jax.random.normal(ks[8], (PLANES, PLANES, 1, 1), jnp.float32) * 0.2
    b5 = jax.random.normal(ks[9], (PLANES,), jnp.float32) * 0.1
    return (w1, b1, w2, b2, w3, b3, w4, b4, w5, b5)


if __name__ == "__main__":
    key = jax.random.PRNGKey(0)
    kx, kp = jax.random.split(key)
    x = jax.random.normal(kx, (N, CIN, H, W), jnp.float32)   # PyTorch NCHW
    params = init_params(kp)

    cam = jax.jit(cam_block)
    y = jax.block_until_ready(cam(x, params))
    y_ref = jax.block_until_ready(ref_cam_block(x, params))

    assert y.shape == (N, PLANES, H, W), y.shape
    err = float(jnp.max(jnp.abs(y - y_ref)))
    assert jnp.allclose(y, y_ref, rtol=1e-4, atol=1e-4), f"max abs err={err}"
    print("KERNEL_OK")
</pallas_src>

<mosaic_0001>
module attributes {stable_mosaic.version = 11 : i64} {
  func.func @cam_fused_kernel(%arg0: memref<36x512xf32, #tpu.memory_space<vmem>>, %arg1: memref<324x8xf32, #tpu.memory_space<vmem>>, %arg2: memref<144x324xf32, #tpu.memory_space<vmem>>, %arg3: memref<208x72xf32, #tpu.memory_space<vmem>>, %arg4: memref<2x8x256xf32, #tpu.memory_space<vmem>>) attributes {dimension_semantics = [], scalar_prefetch = 0 : i64, scratch_operands = 0 : i64, tpu.core_type = #tpu.core_type<tc>} {
    %c0 = arith.constant 0 : index
    %c0_0 = arith.constant 0 : index
    %0 = vector.load %arg3[%c0, %c0_0] : memref<208x72xf32, #tpu.memory_space<vmem>>, vector<8x36xf32>
    %c8 = arith.constant 8 : index
    %c0_1 = arith.constant 0 : index
    %1 = vector.load %arg3[%c8, %c0_1] : memref<208x72xf32, #tpu.memory_space<vmem>>, vector<8x72xf32>
    %c16 = arith.constant 16 : index
    %c0_2 = arith.constant 0 : index
    %2 = vector.load %arg3[%c16, %c0_2] : memref<208x72xf32, #tpu.memory_space<vmem>>, vector<8x8xf32>
    %c24 = arith.constant 24 : index
    %c0_3 = arith.constant 0 : index
    %3 = vector.load %arg3[%c24, %c0_3] : memref<208x72xf32, #tpu.memory_space<vmem>>, vector<8x8xf32>
    %c32 = arith.constant 32 : index
    %c0_4 = arith.constant 0 : index
    %4 = vector.load %arg3[%c32, %c0_4] : memref<208x72xf32, #tpu.memory_space<vmem>>, vector<72x1xf32>
    %c104 = arith.constant 104 : index
    %c0_5 = arith.constant 0 : index
    %5 = vector.load %arg3[%c104, %c0_5] : memref<208x72xf32, #tpu.memory_space<vmem>>, vector<72x1xf32>
    %c176 = arith.constant 176 : index
    %c0_6 = arith.constant 0 : index
    %6 = vector.load %arg3[%c176, %c0_6] : memref<208x72xf32, #tpu.memory_space<vmem>>, vector<8x1xf32>
    %c184 = arith.constant 184 : index
    %c0_7 = arith.constant 0 : index
    %7 = vector.load %arg3[%c184, %c0_7] : memref<208x72xf32, #tpu.memory_space<vmem>>, vector<8x1xf32>
    %c192 = arith.constant 192 : index
    %c0_8 = arith.constant 0 : index
    %8 = vector.load %arg3[%c192, %c0_8] : memref<208x72xf32, #tpu.memory_space<vmem>>, vector<8x1xf32>
    %c200 = arith.constant 200 : index
    %c0_9 = arith.constant 0 : index
    %9 = vector.load %arg3[%c200, %c0_9] : memref<208x72xf32, #tpu.memory_space<vmem>>, vector<1x8xf32>
    %c0_10 = arith.constant 0 : index
    %c0_11 = arith.constant 0 : index
    %10 = vector.load %arg2[%c0_10, %c0_11] : memref<144x324xf32, #tpu.memory_space<vmem>>, vector<72x324xf32>
    %c72 = arith.constant 72 : index
    %c0_12 = arith.constant 0 : index
    %11 = vector.load %arg2[%c72, %c0_12] : memref<144x324xf32, #tpu.memory_space<vmem>>, vector<72x72xf32>
    %c0_13 = arith.constant 0 : index
    %c0_14 = arith.constant 0 : index
    %12 = vector.load %arg0[%c0_13, %c0_14] : memref<36x512xf32, #tpu.memory_space<vmem>>, vector<36x512xf32>
    %cst = arith.constant dense<0.000000e+00> : vector<8x512xf32>
    %13 = tpu.matmul %0, %12, %cst {dimension_numbers = #tpu.dot_dimension_numbers<[1], [0], [0], [1], [0, 0, 1, 1], [], []>} : vector<8x36xf32>, vector<36x512xf32>, vector<8x512xf32> -> vector<8x512xf32>
    %14 = vector.broadcast %6 : vector<8x1xf32> to vector<8x512xf32>
    %15 = arith.addf %13, %14 : vector<8x512xf32>
    %cst_15 = arith.constant 0.000000e+00 : f32
    %16 = vector.broadcast %cst_15 : f32 to vector<8x512xf32>
    %17 = arith.cmpf oge, %15, %16 : vector<8x512xf32>
    %cst_16 = arith.constant 2.500000e-01 : f32
    %18 = vector.broadcast %cst_16 : f32 to vector<8x512xf32>
    %19 = arith.mulf %18, %15 : vector<8x512xf32>
    %20 = arith.select %17, %15, %19 : vector<8x512xi1>, vector<8x512xf32>
    %c0_17 = arith.constant 0 : index
    %c0_18 = arith.constant 0 : index
    %21 = vector.load %arg1[%c0_17, %c0_18] : memref<324x8xf32, #tpu.memory_space<vmem>>, vector<324x8xf32>
    %cst_19 = arith.constant dense<0.000000e+00> : vector<72x8xf32>
    %22 = tpu.matmul %10, %21, %cst_19 {dimension_numbers = #tpu.dot_dimension_numbers<[1], [0], [0], [1], [0, 0, 1, 1], [], []>} : vector<72x324xf32>, vector<324x8xf32>, vector<72x8xf32> -> vector<72x8xf32>
    %23 = vector.broadcast %4 : vector<72x1xf32> to vector<72x8xf32>
    %24 = arith.addf %22, %23 : vector<72x8xf32>
    %cst_20 = arith.constant 0.000000e+00 : f32
    %25 = vector.broadcast %cst_20 : f32 to vector<72x8xf32>
    %26 = arith.cmpf oge, %24, %25 : vector<72x8xf32>
    %cst_21 = arith.constant 2.500000e-01 : f32
    %27 = vector.broadcast %cst_21 : f32 to vector<72x8xf32>
    %28 = arith.mulf %27, %24 : vector<72x8xf32>
    %29 = arith.select %26, %24, %28 : vector<72x8xi1>, vector<72x8xf32>
    %cst_22 = arith.constant dense<0.000000e+00> : vector<72x8xf32>
    %30 = tpu.matmul %11, %29, %cst_22 {dimension_numbers = #tpu.dot_dimension_numbers<[1], [0], [0], [1], [0, 0, 1, 1], [], []>} : vector<72x72xf32>, vector<72x8xf32>, vector<72x8xf32> -> vector<72x8xf32>
    %31 = vector.broadcast %5 : vector<72x1xf32> to vector<72x8xf32>
    %32 = arith.addf %30, %31 : vector<72x8xf32>
    %cst_23 = arith.constant 0.000000e+00 : f32
    %33 = vector.broadcast %cst_23 : f32 to vector<72x8xf32>
    %34 = arith.cmpf oge, %32, %33 : vector<72x8xf32>
    %cst_24 = arith.constant 2.000000e-01 : f32
    %35 = vector.broadcast %cst_24 : f32 to vector<72x8xf32>
    %36 = arith.mulf %35, %32 : vector<72x8xf32>
    %37 = arith.select %34, %32, %36 : vector<72x8xi1>, vector<72x8xf32>
    %cst_25 = arith.constant dense<0.000000e+00> : vector<8x8xf32>
    %38 = tpu.matmul %1, %37, %cst_25 {dimension_numbers = #tpu.dot_dimension_numbers<[1], [0], [0], [1], [0, 0, 1, 1], [], []>} : vector<8x72xf32>, vector<72x8xf32>, vector<8x8xf32> -> vector<8x8xf32>
    %39 = vector.broadcast %7 : vector<8x1xf32> to vector<8x8xf32>
    %40 = arith.addf %38, %39 : vector<8x8xf32>
    %cst_26 = arith.constant 0.000000e+00 : f32
    %41 = vector.broadcast %cst_26 : f32 to vector<8x8xf32>
    %42 = arith.cmpf oge, %40, %41 : vector<8x8xf32>
    %cst_27 = arith.constant 1.500000e-01 : f32
    %43 = vector.broadcast %cst_27 : f32 to vector<8x8xf32>
    %44 = arith.mulf %43, %40 : vector<8x8xf32>
    %45 = arith.select %42, %40, %44 : vector<8x8xi1>, vector<8x8xf32>
    %46 = vector.extract_strided_slice %45 {offsets = [0, 0], sizes = [8, 4], strides = [1, 1]} : vector<8x8xf32> to vector<8x4xf32>
    %cst_28 = arith.constant dense<0.000000e+00> : vector<8xf32>
    %47 = vector.multi_reduction <add>, %46, %cst_28 [1] : vector<8x4xf32> to vector<8xf32>
    %48 = vector.shape_cast %47 : vector<8xf32> to vector<8x1xf32>
    %cst_29 = arith.constant 4.000000e+00 : f32
    %49 = vector.broadcast %cst_29 : f32 to vector<8x1xf32>
    %50 = arith.divf %48, %49 : vector<8x1xf32>
    %51 = vector.broadcast %50 : vector<8x1xf32> to vector<8x8xf32>
    %52 = arith.mulf %2, %51 : vector<8x8xf32>
    %cst_30 = arith.constant dense<0.000000e+00> : vector<8xf32>
    %53 = vector.multi_reduction <add>, %52, %cst_30 [0] : vector<8x8xf32> to vector<8xf32>
    %54 = vector.shape_cast %53 : vector<8xf32> to vector<1x8xf32>
    %55 = arith.addf %54, %9 : vector<1x8xf32>
    %cst_31 = arith.constant 0.000000e+00 : f32
    %56 = vector.broadcast %cst_31 : f32 to vector<1x8xf32>
    %57 = arith.cmpf oge, %55, %56 : vector<1x8xf32>
    %cst_32 = arith.constant 1.000000e-01 : f32
    %58 = vector.broadcast %cst_32 : f32 to vector<1x8xf32>
    %59 = arith.mulf %58, %55 : vector<1x8xf32>
    %60 = arith.select %57, %55, %59 : vector<1x8xi1>, vector<1x8xf32>
    %61 = vector.broadcast %60 : vector<1x8xf32> to vector<8x8xf32>
    %62 = arith.mulf %3, %61 : vector<8x8xf32>
    %cst_33 = arith.constant dense<0.000000e+00> : vector<8xf32>
    %63 = vector.multi_reduction <add>, %62, %cst_33 [1] : vector<8x8xf32> to vector<8xf32>
    %64 = vector.shape_cast %63 : vector<8xf32> to vector<8x1xf32>
    %65 = arith.addf %64, %8 : vector<8x1xf32>
    %66 = arith.negf %65 : vector<8x1xf32>
    %67 = math.exp %66 : vector<8x1xf32>
    %cst_34 = arith.constant 1.000000e+00 : f32
    %68 = vector.broadcast %cst_34 : f32 to vector<8x1xf32>
    %69 = arith.addf %68, %67 : vector<8x1xf32>
    %70 = arith.divf %68, %69 : vector<8x1xf32>
    %71 = vector.extract_strided_slice %20 {offsets = [0, 0], sizes = [8, 256], strides = [1, 1]} : vector<8x512xf32> to vector<8x256xf32>
    %72 = vector.broadcast %70 : vector<8x1xf32> to vector<8x256xf32>
    %73 = arith.mulf %71, %72 : vector<8x256xf32>
    %c0_35 = arith.constant 0 : index
    %c0_36 = arith.constant 0 : index
    %c0_37 = arith.constant 0 : index
    %74 = vector.load %arg4[%c0_35, %c0_36, %c0_37] : memref<2x8x256xf32, #tpu.memory_space<vmem>>, vector<1x8x256xf32>
    %75 = vector.shape_cast %74 : vector<1x8x256xf32> to vector<8x256xf32>
    %76 = vector.shape_cast %73 : vector<8x256xf32> to vector<1x8x256xf32>
    tpu.vector_store %arg4[%c0_35, %c0_36, %c0_37], %76 {strides = array<i32>} : memref<2x8x256xf32, #tpu.memory_space<vmem>>, vector<1x8x256xf32>,
    %77 = vector.extract_strided_slice %45 {offsets = [0, 4], sizes = [8, 4], strides = [1, 1]} : vector<8x8xf32> to vector<8x4xf32>
    %cst_38 = arith.constant dense<0.000000e+00> : vector<8xf32>
    %78 = vector.multi_reduction <add>, %77, %cst_38 [1] : vector<8x4xf32> to vector<8xf32>
    %79 = vector.shape_cast %78 : vector<8xf32> to vector<8x1xf32>
    %cst_39 = arith.constant 4.000000e+00 : f32
    %80 = vector.broadcast %cst_39 : f32 to vector<8x1xf32>
    %81 = arith.divf %79, %80 : vector<8x1xf32>
    %82 = vector.broadcast %81 : vector<8x1xf32> to vector<8x8xf32>
    %83 = arith.mulf %2, %82 : vector<8x8xf32>
    %cst_40 = arith.constant dense<0.000000e+00> : vector<8xf32>
    %84 = vector.multi_reduction <add>, %83, %cst_40 [0] : vector<8x8xf32> to vector<8xf32>
    %85 = vector.shape_cast %84 : vector<8xf32> to vector<1x8xf32>
    %86 = arith.addf %85, %9 : vector<1x8xf32>
    %cst_41 = arith.constant 0.000000e+00 : f32
    %87 = vector.broadcast %cst_41 : f32 to vector<1x8xf32>
    %88 = arith.cmpf oge, %86, %87 : vector<1x8xf32>
    %cst_42 = arith.constant 1.000000e-01 : f32
    %89 = vector.broadcast %cst_42 : f32 to vector<1x8xf32>
    %90 = arith.mulf %89, %86 : vector<1x8xf32>
    %91 = arith.select %88, %86, %90 : vector<1x8xi1>, vector<1x8xf32>
    %92 = vector.broadcast %91 : vector<1x8xf32> to vector<8x8xf32>
    %93 = arith.mulf %3, %92 : vector<8x8xf32>
    %cst_43 = arith.constant dense<0.000000e+00> : vector<8xf32>
    %94 = vector.multi_reduction <add>, %93, %cst_43 [1] : vector<8x8xf32> to vector<8xf32>
    %95 = vector.shape_cast %94 : vector<8xf32> to vector<8x1xf32>
    %96 = arith.addf %95, %8 : vector<8x1xf32>
    %97 = arith.negf %96 : vector<8x1xf32>
    %98 = math.exp %97 : vector<8x1xf32>
    %cst_44 = arith.constant 1.000000e+00 : f32
    %99 = vector.broadcast %cst_44 : f32 to vector<8x1xf32>
    %100 = arith.addf %99, %98 : vector<8x1xf32>
    %101 = arith.divf %99, %100 : vector<8x1xf32>
    %102 = vector.extract_strided_slice %20 {offsets = [0, 256], sizes = [8, 256], strides = [1, 1]} : vector<8x512xf32> to vector<8x256xf32>
    %103 = vector.broadcast %101 : vector<8x1xf32> to vector<8x256xf32>
    %104 = arith.mulf %102, %103 : vector<8x256xf32>
    %c1 = arith.constant 1 : index
    %c0_45 = arith.constant 0 : index
    %c0_46 = arith.constant 0 : index
    %105 = vector.load %arg4[%c1, %c0_45, %c0_46] : memref<2x8x256xf32, #tpu.memory_space<vmem>>, vector<1x8x256xf32>
    %106 = vector.shape_cast %105 : vector<1x8x256xf32> to vector<8x256xf32>
    %107 = vector.shape_cast %104 : vector<8x256xf32> to vector<1x8x256xf32>
    tpu.vector_store %arg4[%c1, %c0_45, %c0_46], %107 {strides = array<i32>} : memref<2x8x256xf32, #tpu.memory_space<vmem>>, vector<1x8x256xf32>,
    return
  }
}

</mosaic_0001>

<llo_original>
// kernel: mul.15
$region0: #{mul.15}
  %s0 = inlined_call_operand.vmem [shape: f32[8,3,3,4], index: 0, kind: input, shape index: {}]
  %s1 = inlined_call_operand.vmem [shape: f32[8,36], index: 1, kind: output, shape index: {}]
  $region1: #{mul.15} parent=0
    #allocation0 [shape = 'u8[36864]{0}', space=vmem, size = 0x9000, scoped, tag = 'scoped mem for input reshape']
    %s3 = ssub.s32 16, 1
    %s4 = scalar_lea.vmem %s0, 32
    %v5 = vld [vmem:[%s4] sm:%s3]
    %s6 = scalar_lea.vmem [#allocation0], 64
    %7 = vst [vmem:[%s6] sm:%s3] %v5
    %s8 = scalar_lea.vmem %s0, 28
    %v9 = vld [vmem:[%s8] sm:%s3]
    %s10 = scalar_lea.vmem [#allocation0], 56
    %11 = vst [vmem:[%s10] sm:%s3] %v9
    %s12 = scalar_lea.vmem %s0, 24
    %v13 = vld [vmem:[%s12] sm:%s3]
    %s14 = scalar_lea.vmem [#allocation0], 48
    %15 = vst [vmem:[%s14] sm:%s3] %v13
    %s16 = scalar_lea.vmem %s0, 20
    %v17 = vld [vmem:[%s16] sm:%s3]
    %s18 = scalar_lea.vmem [#allocation0], 40
    %19 = vst [vmem:[%s18] sm:%s3] %v17
    %s20 = scalar_lea.vmem %s0, 16
    %v21 = vld [vmem:[%s20] sm:%s3]
    %s22 = scalar_lea.vmem [#allocation0], 32
    %23 = vst [vmem:[%s22] sm:%s3] %v21
    %s24 = scalar_lea.vmem %s0, 12
    %v25 = vld [vmem:[%s24] sm:%s3]
    %s26 = scalar_lea.vmem [#allocation0], 24
    %27 = vst [vmem:[%s26] sm:%s3] %v25
    %s28 = scalar_lea.vmem %s0, 8
    %v29 = vld [vmem:[%s28] sm:%s3]
    %s30 = scalar_lea.vmem [#allocation0], 16
    %31 = vst [vmem:[%s30] sm:%s3] %v29
    %s32 = scalar_lea.vmem %s0, 4
    %v33 = vld [vmem:[%s32] sm:%s3]
    %s34 = scalar_lea.vmem [#allocation0], 8
    %35 = vst [vmem:[%s34] sm:%s3] %v33
    %v36 = vld [vmem:[%s0] sm:%s3]
    %37 = vst [vmem:[#allocation0] sm:%s3] %v36
    %v38 = vld [vmem:[#allocation0] sm:$0xf]
    %vm39 = vcmask 64512
    %40 = vst.msk [vmem:[%s1] sm:$0xf] %vm39, %v38
    %s41 = scalar_lea.vmem [#allocation0], 8
    %v42 = vld [vmem:[%s41] sm:$0xf]
    %vm43 = vcmask 64512
    %s44 = scalar_lea.vmem %s1, 4
    %45 = vst.msk [vmem:[%s44] sm:$0xf] %vm43, %v42
    %s46 = scalar_lea.vmem [#allocation0], 16
    %v47 = vld [vmem:[%s46] sm:$0xf]
    %vm48 = vcmask 64512
    %s49 = scalar_lea.vmem %s1, 8
    %50 = vst.msk [vmem:[%s49] sm:$0xf] %vm48, %v47
    %s51 = scalar_lea.vmem [#allocation0], 24
    %v52 = vld [vmem:[%s51] sm:$0xf]
    %vm53 = vcmask 64512
    %s54 = scalar_lea.vmem %s1, 12
    %55 = vst.msk [vmem:[%s54] sm:$0xf] %vm53, %v52
    %s56 = scalar_lea.vmem [#allocation0], 32
    %v57 = vld [vmem:[%s56] sm:$0xf]
    %vm58 = vcmask 64512
    %s59 = scalar_lea.vmem %s1, 16
    %60 = vst.msk [vmem:[%s59] sm:$0xf] %vm58, %v57
    %s61 = scalar_lea.vmem [#allocation0], 40
    %v62 = vld [vmem:[%s61] sm:$0xf]
    %vm63 = vcmask 64512
    %s64 = scalar_lea.vmem %s1, 20
    %65 = vst.msk [vmem:[%s64] sm:$0xf] %vm63, %v62
    %s66 = scalar_lea.vmem [#allocation0], 48
    %v67 = vld [vmem:[%s66] sm:$0xf]
    %vm68 = vcmask 64512
    %s69 = scalar_lea.vmem %s1, 24
    %70 = vst.msk [vmem:[%s69] sm:$0xf] %vm68, %v67
    %s71 = scalar_lea.vmem [#allocation0], 56
    %v72 = vld [vmem:[%s71] sm:$0xf]
    %vm73 = vcmask 64512
    %s74 = scalar_lea.vmem %s1, 28
    %75 = vst.msk [vmem:[%s74] sm:$0xf] %vm73, %v72
    %s76 = scalar_lea.vmem [#allocation0], 64
    %v77 = vld [vmem:[%s76] sm:$0xf]
    %vm78 = vcmask 64512
    %s79 = scalar_lea.vmem %s1, 32
    %80 = vst.msk [vmem:[%s79] sm:$0xf] %vm78, %v77

// kernel: cam_block.1
$region0: #{cam_block.1}
  #allocation0 [shape = 'u32[]', space=smem, size = 0x4, offset = 0x4, fixed_abs, tag = 'smem constant byte address 0x4 - core index']
  #allocation1 [shape = 'u32[72,128]{1,0:T(1,128)}', space=vmem, size = 0x9000, scoped, tag = 'internal scratch']
  %s0 = inlined_call_operand.vmem [shape: f32[36,512], index: 0, kind: input, shape index: {}]
  %s1 = inlined_call_operand.vmem [shape: f32[324,8], index: 1, kind: input, shape index: {}]
  %s2 = inlined_call_operand.vmem [shape: f32[144,324], index: 2, kind: input, shape index: {}]
  %s3 = inlined_call_operand.vmem [shape: f32[208,72], index: 3, kind: input, shape index: {}]
  %s4 = inlined_call_operand.vmem [shape: f32[2,8,256], index: 4, kind: output, shape index: {}]
  %s5 = sld [smem:[#allocation0]]
  $region26: #{cam_block.1} parent=0
    _
  %s7 = ssub.s32 1, %s5
  %s8 = scalar_select 0, %s7, %s5
  // Predicated region
  $region2: #{cam_block.1} parent=0 // pred_check
    _
  $region3: #{cam_block.1} parent=0 // pred_check_branch
    %10 = sbr.rel (0) target = $region5
  $region4: #{cam_block.1} parent=0 // pred_region
    _
  $region5: #{cam_block.1} parent=0 // pred_fallthru
    _
  // Predicated region
  $region6: #{cam_block.1} parent=0 // pred_check
    _
  $region7: #{cam_block.1} parent=0 // pred_check_branch
    %12 = sbr.rel (0) target = $region9
  $region8: #{cam_block.1} parent=0 // pred_region
    _
  $region9: #{cam_block.1} parent=0 // pred_fallthru
    _
  // Predicated region
  $region10: #{cam_block.1} parent=0 // pred_check
    _
  $region11: #{cam_block.1} parent=0 // pred_check_branch
    %14 = sbr.rel (0) target = $region13
  $region12: #{cam_block.1} parent=0 // pred_region
    _
  $region13: #{cam_block.1} parent=0 // pred_fallthru
    _
  // Predicated region
  $region14: #{cam_block.1} parent=0 // pred_check
    _
  $region15: #{cam_block.1} parent=0 // pred_check_branch
    %16 = sbr.rel (0) target = $region17
  $region16: #{cam_block.1} parent=0 // pred_region
    _
  $region17: #{cam_block.1} parent=0 // pred_fallthru
    _
  %v17 = vld [vmem:[%s3] sm:$0xff]
  %v18 = vld [vmem:[%s3 + $0x8] sm:$0xff]
  %v19 = vld [vmem:[%s3 + $0x10] sm:$0xff]
  %v20 = vld [vmem:[%s3 + $0x18] sm:$0xff]
  %v21 = vld [vmem:[%s3 + $0x20] sm:$0xff]
  %v22 = vld [vmem:[%s3 + $0x28] sm:$0xff]
  %v23 = vld [vmem:[%s3 + $0x30] sm:$0xff]
  %v24 = vld [vmem:[%s3 + $0x38] sm:$0xff]
  %v25 = vld [vmem:[%s3 + $0x40] sm:$0xff]
  %v26 = vld [vmem:[%s3 + $0x48] sm:$0xff]
  %v27 = vld [vmem:[%s3 + $0x50] sm:$0xff]
  %v28 = vld [vmem:[%s3 + $0x58] sm:$0xff]
  %v29 = vld [vmem:[%s3 + $0x60] sm:$0xff]
  %v30 = vld [vmem:[%s3 + $0x68] sm:$0xff]
  %v31 = vld [vmem:[%s3 + $0x70] sm:$0xff]
  %v32 = vld [vmem:[%s3 + $0x78] sm:$0xff]
  %v33 = vld [vmem:[%s3 + $0x80] sm:$0xff]
  %v34 = vld [vmem:[%s3 + $0x88] sm:$0xff]
  %v35 = vld [vmem:[%s3 + $0x90] sm:$0xff]
  %v36 = vld [vmem:[%s3 + $0x98] sm:$0xff]
  %v37 = vld [vmem:[%s3 + $0xa0] sm:$0xff]
  %v38 = vld [vmem:[%s3 + $0xa8] sm:$0xff]
  %v39 = vld [vmem:[%s3 + $0xb0] sm:$0xff]
  %v40 = vld [vmem:[%s3 + $0xb8] sm:$0xff]
  %v41 = vld [vmem:[%s3 + $0xc0] sm:$0xff]
  %v42 = vld [vmem:[%s3 + $0xc8] sm:$0x1]
  %v43 = vld [vmem:[%s2] sm:$0xff]
  %v44 = vld [vmem:[%s2 + $0x8] sm:$0xff]
  %v45 = vld [vmem:[%s2 + $0x10] sm:$0xff]
  %v46 = vld [vmem:[%s2 + $0x18] sm:$0xff]
  %v47 = vld [vmem:[%s2 + $0x20] sm:$0xff]
  %v48 = vld [vmem:[%s2 + $0x28] sm:$0xff]
  %v49 = vld [vmem:[%s2 + $0x30] sm:$0xff]
  %v50 = vld [vmem:[%s2 + $0x38] sm:$0xff]
  %v51 = vld [vmem:[%s2 + $0x40] sm:$0xff]
  %v52 = vld [vmem:[%s2 + $0x48] sm:$0xff]
  %v53 = vld [vmem:[%s2 + $0x50] sm:$0xff]
  %v54 = vld [vmem:[%s2 + $0x58] sm:$0xff]
  %v55 = vld [vmem:[%s2 + $0x60] sm:$0xff]
  %v56 = vld [vmem:[%s2 + $0x68] sm:$0xff]
  %v57 = vld [vmem:[%s2 + $0x70] sm:$0xff]
  %v58 = vld [vmem:[%s2 + $0x78] sm:$0xff]
  %v59 = vld [vmem:[%s2 + $0x80] sm:$0xff]
  %v60 = vld [vmem:[%s2 + $0x88] sm:$0xff]
  %v61 = vld [vmem:[%s2 + $0x90] sm:$0xff]
  %v62 = vld [vmem:[%s2 + $0x98] sm:$0xff]
  %v63 = vld [vmem:[%s2 + $0xa0] sm:$0xff]
  %v64 = vld [vmem:[%s2 + $0xa8] sm:$0xff]
  %v65 = vld [vmem:[%s2 + $0xb0] sm:$0xff]
  %v66 = vld [vmem:[%s2 + $0xb8] sm:$0xff]
  %v67 = vld [vmem:[%s2 + $0xc0] sm:$0xff]
  %v68 = vld [vmem:[%s2 + $0xc8] sm:$0xff]
  %v69 = vld [vmem:[%s2 + $0xd0] sm:$0xff]
  %v70 = vld [vmem:[%s2 + $0xd8] sm:$0xff]
  %v71 = vld [vmem:[%s2 + $0xf0] sm:$0xff]
  %v72 = vld [vmem:[%s2 + $0x108] sm:$0xff]
  %v73 = vld [vmem:[%s2 + $0x120] sm:$0xff]
  %v74 = vld [vmem:[%s2 + $0x138] sm:$0xff]
  %v75 = vld [vmem:[%s2 + $0x150] sm:$0xff]
  %v76 = vld [vmem:[%s2 + $0x168] sm:$0xff]
  %v77 = vld [vmem:[%s2 + $0x180] sm:$0xff]
  %v78 = vld [vmem:[%s2 + $0x198] sm:$0xff]
  %v79 = vld [vmem:[%s0] sm:$0xff]
  %v80 = vld [vmem:[%s0 + $0x8] sm:$0xff]
  %v81 = vld [vmem:[%s0 + $0x10] sm:$0xff]
  %v82 = vld [vmem:[%s0 + $0x18] sm:$0xff]
  %v83 = vld [vmem:[%s0 + $0x20] sm:$0xff]
  %v84 = vld [vmem:[%s0 + $0x28] sm:$0xff]
  %v85 = vld [vmem:[%s0 + $0x30] sm:$0xff]
  %v86 = vld [vmem:[%s0 + $0x38] sm:$0xff]
  %v87 = vld [vmem:[%s0 + $0x40] sm:$0xff]
  %v88 = vld [vmem:[%s0 + $0x48] sm:$0xff]
  %v89 = vld [vmem:[%s0 + $0x50] sm:$0xff]
  %v90 = vld [vmem:[%s0 + $0x58] sm:$0xff]
  %v91 = vld [vmem:[%s0 + $0x60] sm:$0xff]
  %v92 = vld [vmem:[%s0 + $0x68] sm:$0xff]
  %v93 = vld [vmem:[%s0 + $0x70] sm:$0xff]
  %v94 = vld [vmem:[%s0 + $0x78] sm:$0xff]
  %v95 = vld [vmem:[%s0 + $0x80] sm:$0xf]
  %v96 = vld [vmem:[%s0 + $0x88] sm:$0xf]
  %v97 = vld [vmem:[%s0 + $0x90] sm:$0xf]
  %v98 = vld [vmem:[%s0 + $0x98] sm:$0xf]
  %100 = vset.pattern.permute.xlu0 0
  %101 = vperm.xlu0 %100, %v39
  %v102 = vpop.permute.xlu0 %101
  %vm104 = vcmask 293888
  %v106 = vsel %vm104, %v17, 0
  %vm108 = vcmask 1043456
  %v110 = vsel %vm108, %v95, 0
  %v113 = vsel %vm108, %v96, 0
  %v116 = vsel %vm108, %v97, 0
  %v119 = vsel %vm108, %v98, 0
  %121 = vmatpush.msra.mxu0 0.0
  %122 = vmatpush.msra.mxu0 0.0
  %123 = vmatpush.msra.mxu0 0.0
  %124 = vmatpush.msra.mxu0 0.0
  %125 = vmatpush.msra.mxu0 0.0
  %126 = vmatpush.msra.mxu0 0.0
  %127 = vmatpush.msra.mxu0 0.0
  %128 = vmatpush.msra.mxu0 0.0
  %129 = vmatpush.msra.mxu0 0.0
  %130 = vmatpush.msra.mxu0 0.0
  %131 = vmatpush.msra.mxu0 0.0
  %132 = vmatpush.msra.mxu0 %v110
  %133 = vmatpush.msra.mxu0 %v91
  %134 = vmatpush.msra.mxu0 %v87
  %135 = vmatpush.msra.mxu0 %v83
  %136 = vmatpush.msra.mxu0 %v79
  %137 = vmatmul.f32.gmra.mxu0 %v106
  %v138 = vpop.f32.mrf.mxu0
  %v139 = vadd.f32 %v102, %v138
  %140 = vdwg.mxu0
  %141 = vmatpush.msra.mxu0 0.0
  %142 = vmatpush.msra.mxu0 0.0
  %143 = vmatpush.msra.mxu0 0.0
  %144 = vmatpush.msra.mxu0 0.0
  %145 = vmatpush.msra.mxu0 0.0
  %146 = vmatpush.msra.mxu0 0.0
  %147 = vmatpush.msra.mxu0 0.0
  %148 = vmatpush.msra.mxu0 0.0
  %149 = vmatpush.msra.mxu0 0.0
  %150 = vmatpush.msra.mxu0 0.0
  %151 = vmatpush.msra.mxu0 0.0
  %152 = vmatpush.msra.mxu0 %v113
  %153 = vmatpush.msra.mxu0 %v92
  %154 = vmatpush.msra.mxu0 %v88
  %155 = vmatpush.msra.mxu0 %v84
  %156 = vmatpush.msra.mxu0 %v80
  %157 = vmatmul.f32.gmra.mxu0 %v106
  %v158 = vpop.f32.mrf.mxu0
  %v159 = vadd.f32 %v102, %v158
  %160 = vdwg.mxu0
  %161 = vmatpush.msra.mxu0 0.0
  %162 = vmatpush.msra.mxu0 0.0
  %163 = vmatpush.msra.mxu0 0.0
  %164 = vmatpush.msra.mxu0 0.0
  %165 = vmatpush.msra.mxu0 0.0
  %166 = vmatpush.msra.mxu0 0.0
  %167 = vmatpush.msra.mxu0 0.0
  %168 = vmatpush.msra.mxu0 0.0
  %169 = vmatpush.msra.mxu0 0.0
  %170 = vmatpush.msra.mxu0 0.0
  %171 = vmatpush.msra.mxu0 0.0
  %172 = vmatpush.msra.mxu0 %v116
  %173 = vmatpush.msra.mxu0 %v93
  %174 = vmatpush.msra.mxu0 %v89
  %175 = vmatpush.msra.mxu0 %v85
  %176 = vmatpush.msra.mxu0 %v81
  %177 = vmatmul.f32.gmra.mxu0 %v106
  %v178 = vpop.f32.mrf.mxu0
  %v179 = vadd.f32 %v102, %v178
  %180 = vdwg.mxu0
  %181 = vmatpush.msra.mxu0 0.0
  %182 = vmatpush.msra.mxu0 0.0
  %183 = vmatpush.msra.mxu0 0.0
  %184 = vmatpush.msra.mxu0 0.0
  %185 = vmatpush.msra.mxu0 0.0
  %186 = vmatpush.msra.mxu0 0.0
  %187 = vmatpush.msra.mxu0 0.0
  %188 = vmatpush.msra.mxu0 0.0
  %189 = vmatpush.msra.mxu0 0.0
  %190 = vmatpush.msra.mxu0 0.0
  %191 = vmatpush.msra.mxu0 0.0
  %192 = vmatpush.msra.mxu0 %v119
  %193 = vmatpush.msra.mxu0 %v94
  %194 = vmatpush.msra.mxu0 %v90
  %195 = vmatpush.msra.mxu0 %v86
  %196 = vmatpush.msra.mxu0 %v82
  %197 = vmatmul.f32.gmra.mxu0 %v106
  %v198 = vpop.f32.mrf.mxu0
  %v199 = vadd.f32 %v102, %v198
  %200 = vdwg.mxu0
  %vm201 = vcmp.ge.f32.partialorder %v139, 0.0
  %vm202 = vcmp.ge.f32.partialorder %v159, 0.0
  %vm203 = vcmp.ge.f32.partialorder %v179, 0.0
  %vm204 = vcmp.ge.f32.partialorder %v199, 0.0
  %v205 = vmul.f32 %v139, 0.25
  %v206 = vmul.f32 %v159, 0.25
  %v207 = vmul.f32 %v179, 0.25
  %v208 = vmul.f32 %v199, 0.25
  %v209 = vsel %vm201, %v139, %v205
  %v210 = vsel %vm202, %v159, %v206
  %v211 = vsel %vm203, %v179, %v207
  %v212 = vsel %vm204, %v199, %v208
  %v213 = vld [vmem:[%s1] sm:$0xff]
  %v214 = vld [vmem:[%s1 + $0x8] sm:$0xff]
  %v215 = vld [vmem:[%s1 + $0x10] sm:$0xff]
  %v216 = vld [vmem:[%s1 + $0x18] sm:$0xff]
  %v217 = vld [vmem:[%s1 + $0x20] sm:$0xff]
  %v218 = vld [vmem:[%s1 + $0x28] sm:$0xff]
  %v219 = vld [vmem:[%s1 + $0x30] sm:$0xff]
  %v220 = vld [vmem:[%s1 + $0x38] sm:$0xff]
  %v221 = vld [vmem:[%s1 + $0x40] sm:$0xff]
  %v222 = vld [vmem:[%s1 + $0x48] sm:$0xff]
  %v223 = vld [vmem:[%s1 + $0x50] sm:$0xff]
  %v224 = vld [vmem:[%s1 + $0x58] sm:$0xff]
  %v225 = vld [vmem:[%s1 + $0x60] sm:$0xff]
  %v226 = vld [vmem:[%s1 + $0x68] sm:$0xff]
  %v227 = vld [vmem:[%s1 + $0x70] sm:$0xff]
  %v228 = vld [vmem:[%s1 + $0x78] sm:$0xff]
  %v229 = vld [vmem:[%s1 + $0x80] sm:$0xff]
  %v230 = vld [vmem:[%s1 + $0x88] sm:$0xff]
  %v231 = vld [vmem:[%s1 + $0x90] sm:$0xff]
  %v232 = vld [vmem:[%s1 + $0x98] sm:$0xff]
  %v233 = vld [vmem:[%s1 + $0xa0] sm:$0xff]
  %v234 = vld [vmem:[%s1 + $0xa8] sm:$0xff]
  %v235 = vld [vmem:[%s1 + $0xb0] sm:$0xff]
  %v236 = vld [vmem:[%s1 + $0xb8] sm:$0xff]
  %v237 = vld [vmem:[%s1 + $0xc0] sm:$0xff]
  %v238 = vld [vmem:[%s1 + $0xc8] sm:$0xff]
  %v239 = vld [vmem:[%s1 + $0xd0] sm:$0xff]
  %v240 = vld [vmem:[%s1 + $0xd8] sm:$0xff]
  %v241 = vld [vmem:[%s1 + $0xe0] sm:$0xff]
  %v242 = vld [vmem:[%s1 + $0xe8] sm:$0xff]
  %v243 = vld [vmem:[%s1 + $0xf0] sm:$0xff]
  %v244 = vld [vmem:[%s1 + $0xf8] sm:$0xff]
  %v245 = vld [vmem:[%s1 + $0x100] sm:$0xff]
  %v246 = vld [vmem:[%s1 + $0x108] sm:$0xff]
  %v247 = vld [vmem:[%s1 + $0x110] sm:$0xff]
  %v248 = vld [vmem:[%s1 + $0x118] sm:$0xff]
  %v249 = vld [vmem:[%s1 + $0x120] sm:$0xff]
  %v250 = vld [vmem:[%s1 + $0x128] sm:$0xff]
  %v251 = vld [vmem:[%s1 + $0x130] sm:$0xff]
  %v252 = vld [vmem:[%s1 + $0x138] sm:$0xff]
  %v253 = vld [vmem:[%s1 + $0x140] sm:$0xf]
  %255 = vset.pattern.permute.xlu0 0
  %256 = vperm.xlu0 %255, %v21
  %v257 = vpop.permute.xlu0 %256
  %260 = vset.pattern.permute.xlu0 0
  %261 = vperm.xlu0 %260, %v22
  %v262 = vpop.permute.xlu0 %261
  %265 = vset.pattern.permute.xlu0 0
  %266 = vperm.xlu0 %265, %v23
  %v267 = vpop.permute.xlu0 %266
  %270 = vset.pattern.permute.xlu0 0
  %271 = vperm.xlu0 %270, %v24
  %v272 = vpop.permute.xlu0 %271
  %275 = vset.pattern.permute.xlu0 0
  %276 = vperm.xlu0 %275, %v25
  %v277 = vpop.permute.xlu0 %276
  %280 = vset.pattern.permute.xlu0 0
  %281 = vperm.xlu0 %280, %v26
  %v282 = vpop.permute.xlu0 %281
  %285 = vset.pattern.permute.xlu0 0
  %286 = vperm.xlu0 %285, %v27
  %v287 = vpop.permute.xlu0 %286
  %290 = vset.pattern.permute.xlu0 0
  %291 = vperm.xlu0 %290, %v28
  %v292 = vpop.permute.xlu0 %291
  %295 = vset.pattern.permute.xlu0 0
  %296 = vperm.xlu0 %295, %v29
  %v297 = vpop.permute.xlu0 %296
  %vm299 = vcmask 556032
  %v301 = vsel %vm299, %v45, 0
  %v304 = vsel %vm299, %v48, 0
  %v307 = vsel %vm299, %v51, 0
  %v310 = vsel %vm299, %v54, 0
  %v313 = vsel %vm299, %v57, 0
  %v316 = vsel %vm299, %v60, 0
  %v319 = vsel %vm299, %v63, 0
  %v322 = vsel %vm299, %v66, 0
  %v325 = vsel %vm299, %v69, 0
  %v328 = vsel %vm108, %v253, 0
  %330 = vmatpush.msra.mxu0 %v228
  %331 = vmatpush.msra.mxu0 %v227
  %332 = vmatpush.msra.mxu0 %v226
  %333 = vmatpush.msra.mxu0 %v225
  %334 = vmatpush.msra.mxu0 %v224
  %335 = vmatpush.msra.mxu0 %v223
  %336 = vmatpush.msra.mxu0 %v222
  %337 = vmatpush.msra.mxu0 %v221
  %338 = vmatpush.msra.mxu0 %v220
  %339 = vmatpush.msra.mxu0 %v219
  %340 = vmatpush.msra.mxu0 %v218
  %341 = vmatpush.msra.mxu0 %v217
  %342 = vmatpush.msra.mxu0 %v216
  %343 = vmatpush.msra.mxu0 %v215
  %344 = vmatpush.msra.mxu0 %v214
  %345 = vmatpush.msra.mxu0 %v213
  %346 = vmatmul.f32.gmra.mxu0 %v43
  %v347 = vpop.f32.mrf.mxu0
  %v348 = vadd.f32 %v257, %v347
  %349 = vmatmul.f32.gmra.mxu0 %v46
  %v350 = vpop.f32.mrf.mxu0
  %v351 = vadd.f32 %v262, %v350
  %352 = vmatmul.f32.gmra.mxu0 %v49
  %v353 = vpop.f32.mrf.mxu0
  %v354 = vadd.f32 %v267, %v353
  %355 = vmatmul.f32.gmra.mxu0 %v52
  %v356 = vpop.f32.mrf.mxu0
  %v357 = vadd.f32 %v272, %v356
  %358 = vmatmul.f32.gmra.mxu0 %v55
  %v359 = vpop.f32.mrf.mxu0
  %v360 = vadd.f32 %v277, %v359
  %361 = vmatmul.f32.gmra.mxu0 %v58
  %v362 = vpop.f32.mrf.mxu0
  %v363 = vadd.f32 %v282, %v362
  %364 = vmatmul.f32.gmra.mxu0 %v61
  %v365 = vpop.f32.mrf.mxu0
  %v366 = vadd.f32 %v287, %v365
  %367 = vmatmul.f32.gmra.mxu0 %v64
  %v368 = vpop.f32.mrf.mxu0
  %v369 = vadd.f32 %v292, %v368
  %370 = vmatmul.f32.gmra.mxu0 %v67
  %v371 = vpop.f32.mrf.mxu0
  %v372 = vadd.f32 %v297, %v371
  %373 = vdwg.mxu0
  %374 = vmatpush.msra.mxu0 %v244
  %375 = vmatpush.msra.mxu0 %v243
  %376 = vmatpush.msra.mxu0 %v242
  %377 = vmatpush.msra.mxu0 %v241
  %378 = vmatpush.msra.mxu0 %v240
  %379 = vmatpush.msra.mxu0 %v239
  %380 = vmatpush.msra.mxu0 %v238
  %381 = vmatpush.msra.mxu0 %v237
  %382 = vmatpush.msra.mxu0 %v236
  %383 = vmatpush.msra.mxu0 %v235
  %384 = vmatpush.msra.mxu0 %v234
  %385 = vmatpush.msra.mxu0 %v233
  %386 = vmatpush.msra.mxu0 %v232
  %387 = vmatpush.msra.mxu0 %v231
  %388 = vmatpush.msra.mxu0 %v230
  %389 = vmatpush.msra.mxu0 %v229
  %390 = vmatmul.f32.gmra.mxu0 %v44
  %v391 = vpop.f32.mrf.mxu0
  %v392 = vadd.f32 %v348, %v391
  %393 = vmatmul.f32.gmra.mxu0 %v47
  %v394 = vpop.f32.mrf.mxu0
  %v395 = vadd.f32 %v351, %v394
  %396 = vmatmul.f32.gmra.mxu0 %v50
  %v397 = vpop.f32.mrf.mxu0
  %v398 = vadd.f32 %v354, %v397
  %399 = vmatmul.f32.gmra.mxu0 %v53
  %v400 = vpop.f32.mrf.mxu0
  %v401 = vadd.f32 %v357, %v400
  %402 = vmatmul.f32.gmra.mxu0 %v56
  %v403 = vpop.f32.mrf.mxu0
  %v404 = vadd.f32 %v360, %v403
  %405 = vmatmul.f32.gmra.mxu0 %v59
  %v406 = vpop.f32.mrf.mxu0
  %v407 = vadd.f32 %v363, %v406
  %408 = vmatmul.f32.gmra.mxu0 %v62
  %v409 = vpop.f32.mrf.mxu0
  %v410 = vadd.f32 %v366, %v409
  %411 = vmatmul.f32.gmra.mxu0 %v65
  %v412 = vpop.f32.mrf.mxu0
  %v413 = vadd.f32 %v369, %v412
  %414 = vmatmul.f32.gmra.mxu0 %v68
  %v415 = vpop.f32.mrf.mxu0
  %v416 = vadd.f32 %v372, %v415
  %417 = vdwg.mxu0
  %418 = vmatpush.msra.mxu0 0.0
  %419 = vmatpush.msra.mxu0 0.0
  %420 = vmatpush.msra.mxu0 0.0
  %421 = vmatpush.msra.mxu0 0.0
  %422 = vmatpush.msra.mxu0 0.0
  %423 = vmatpush.msra.mxu0 0.0
  %424 = vmatpush.msra.mxu0 0.0
  %425 = vmatpush.msra.mxu0 %v328
  %426 = vmatpush.msra.mxu0 %v252
  %427 = vmatpush.msra.mxu0 %v251
  %428 = vmatpush.msra.mxu0 %v250
  %429 = vmatpush.msra.mxu0 %v249
  %430 = vmatpush.msra.mxu0 %v248
  %431 = vmatpush.msra.mxu0 %v247
  %432 = vmatpush.msra.mxu0 %v246
  %433 = vmatpush.msra.mxu0 %v245
  %434 = vmatmul.f32.gmra.mxu0 %v301
  %v435 = vpop.f32.mrf.mxu0
  %v436 = vadd.f32 %v392, %v435
  %437 = vmatmul.f32.gmra.mxu0 %v304
  %v438 = vpop.f32.mrf.mxu0
  %v439 = vadd.f32 %v395, %v438
  %440 = vmatmul.f32.gmra.mxu0 %v307
  %v441 = vpop.f32.mrf.mxu0
  %v442 = vadd.f32 %v398, %v441
  %443 = vmatmul.f32.gmra.mxu0 %v310
  %v444 = vpop.f32.mrf.mxu0
  %v445 = vadd.f32 %v401, %v444
  %446 = vmatmul.f32.gmra.mxu0 %v313
  %v447 = vpop.f32.mrf.mxu0
  %v448 = vadd.f32 %v404, %v447
  %449 = vmatmul.f32.gmra.mxu0 %v316
  %v450 = vpop.f32.mrf.mxu0
  %v451 = vadd.f32 %v407, %v450
  %452 = vmatmul.f32.gmra.mxu0 %v319
  %v453 = vpop.f32.mrf.mxu0
  %v454 = vadd.f32 %v410, %v453
  %455 = vmatmul.f32.gmra.mxu0 %v322
  %v456 = vpop.f32.mrf.mxu0
  %v457 = vadd.f32 %v413, %v456
  %458 = vmatmul.f32.gmra.mxu0 %v325
  %v459 = vpop.f32.mrf.mxu0
  %v460 = vadd.f32 %v416, %v459
  %461 = vdwg.mxu0
  %vm462 = vcmp.ge.f32.partialorder %v436, 0.0
  %vm463 = vcmp.ge.f32.partialorder %v439, 0.0
  %vm464 = vcmp.ge.f32.partialorder %v442, 0.0
  %vm465 = vcmp.ge.f32.partialorder %v445, 0.0
  %vm466 = vcmp.ge.f32.partialorder %v448, 0.0
  %vm467 = vcmp.ge.f32.partialorder %v451, 0.0
  %vm468 = vcmp.ge.f32.partialorder %v454, 0.0
  %vm469 = vcmp.ge.f32.partialorder %v457, 0.0
  %vm470 = vcmp.ge.f32.partialorder %v460, 0.0
  %v471 = vmul.f32 %v436, 0.25
  %v472 = vmul.f32 %v439, 0.25
  %v473 = vmul.f32 %v442, 0.25
  %v474 = vmul.f32 %v445, 0.25
  %v475 = vmul.f32 %v448, 0.25
  %v476 = vmul.f32 %v451, 0.25
  %v477 = vmul.f32 %v454, 0.25
  %v478 = vmul.f32 %v457, 0.25
  %v479 = vmul.f32 %v460, 0.25
  %v480 = vsel %vm462, %v436, %v471
  %v481 = vsel %vm463, %v439, %v472
  %v482 = vsel %vm464, %v442, %v473
  %v483 = vsel %vm465, %v445, %v474
  %v484 = vsel %vm466, %v448, %v475
  %v485 = vsel %vm467, %v451, %v476
  %v486 = vsel %vm468, %v454, %v477
  %v487 = vsel %vm469, %v457, %v478
  %v488 = vsel %vm470, %v460, %v479
  %490 = vset.pattern.permute.xlu0 0
  %491 = vperm.xlu0 %490, %v30
  %v492 = vpop.permute.xlu0 %491
  %495 = vset.pattern.permute.xlu0 0
  %496 = vperm.xlu0 %495, %v31
  %v497 = vpop.permute.xlu0 %496
  %500 = vset.pattern.permute.xlu0 0
  %501 = vperm.xlu0 %500, %v32
  %v502 = vpop.permute.xlu0 %501
  %505 = vset.pattern.permute.xlu0 0
  %506 = vperm.xlu0 %505, %v33
  %v507 = vpop.permute.xlu0 %506
  %510 = vset.pattern.permute.xlu0 0
  %511 = vperm.xlu0 %510, %v34
  %v512 = vpop.permute.xlu0 %511
  %515 = vset.pattern.permute.xlu0 0
  %516 = vperm.xlu0 %515, %v35
  %v517 = vpop.permute.xlu0 %516
  %520 = vset.pattern.permute.xlu0 0
  %521 = vperm.xlu0 %520, %v36
  %v522 = vpop.permute.xlu0 %521
  %525 = vset.pattern.permute.xlu0 0
  %526 = vperm.xlu0 %525, %v37
  %v527 = vpop.permute.xlu0 %526
  %530 = vset.pattern.permute.xlu0 0
  %531 = vperm.xlu0 %530, %v38
  %v532 = vpop.permute.xlu0 %531
  %vm534 = vcmask 588800
  %v536 = vsel %vm534, %v70, 0
  %v539 = vsel %vm534, %v71, 0
  %v542 = vsel %vm534, %v72, 0
  %v545 = vsel %vm534, %v73, 0
  %v548 = vsel %vm534, %v74, 0
  %v551 = vsel %vm534, %v75, 0
  %v554 = vsel %vm534, %v76, 0
  %v557 = vsel %vm534, %v77, 0
  %v560 = vsel %vm534, %v78, 0
  %562 = vmatpush.msra.mxu0 0.0
  %563 = vmatpush.msra.mxu0 0.0
  %564 = vmatpush.msra.mxu0 0.0
  %565 = vmatpush.msra.mxu0 0.0
  %566 = vmatpush.msra.mxu0 0.0
  %567 = vmatpush.msra.mxu0 0.0
  %568 = vmatpush.msra.mxu0 0.0
  %569 = vmatpush.msra.mxu0 %v488
  %570 = vmatpush.msra.mxu0 %v487
  %571 = vmatpush.msra.mxu0 %v486
  %572 = vmatpush.msra.mxu0 %v485
  %573 = vmatpush.msra.mxu0 %v484
  %574 = vmatpush.msra.mxu0 %v483
  %575 = vmatpush.msra.mxu0 %v482
  %576 = vmatpush.msra.mxu0 %v481
  %577 = vmatpush.msra.mxu0 %v480
  %578 = vmatmul.f32.gmra.mxu0 %v536
  %v579 = vpop.f32.mrf.mxu0
  %v580 = vadd.f32 %v492, %v579
  %581 = vmatmul.f32.gmra.mxu0 %v539
  %v582 = vpop.f32.mrf.mxu0
  %v583 = vadd.f32 %v497, %v582
  %584 = vmatmul.f32.gmra.mxu0 %v542
  %v585 = vpop.f32.mrf.mxu0
  %v586 = vadd.f32 %v502, %v585
  %587 = vmatmul.f32.gmra.mxu0 %v545
  %v588 = vpop.f32.mrf.mxu0
  %v589 = vadd.f32 %v507, %v588
  %590 = vmatmul.f32.gmra.mxu0 %v548
  %v591 = vpop.f32.mrf.mxu0
  %v592 = vadd.f32 %v512, %v591
  %593 = vmatmul.f32.gmra.mxu0 %v551
  %v594 = vpop.f32.mrf.mxu0
  %v595 = vadd.f32 %v517, %v594
  %596 = vmatmul.f32.gmra.mxu0 %v554
  %v597 = vpop.f32.mrf.mxu0
  %v598 = vadd.f32 %v522, %v597
  %599 = vmatmul.f32.gmra.mxu0 %v557
  %v600 = vpop.f32.mrf.mxu0
  %v601 = vadd.f32 %v527, %v600
  %602 = vmatmul.f32.gmra.mxu0 %v560
  %v603 = vpop.f32.mrf.mxu0
  %v604 = vadd.f32 %v532, %v603
  %605 = vdwg.mxu0
  %vm606 = vcmp.ge.f32.partialorder %v580, 0.0
  %vm607 = vcmp.ge.f32.partialorder %v583, 0.0
  %vm608 = vcmp.ge.f32.partialorder %v586, 0.0
  %vm609 = vcmp.ge.f32.partialorder %v589, 0.0
  %vm610 = vcmp.ge.f32.partialorder %v592, 0.0
  %vm611 = vcmp.ge.f32.partialorder %v595, 0.0
  %vm612 = vcmp.ge.f32.partialorder %v598, 0.0
  %vm613 = vcmp.ge.f32.partialorder %v601, 0.0
  %vm614 = vcmp.ge.f32.partialorder %v604, 0.0
  %v615 = vmul.f32 %v580, 0.2
  %v616 = vmul.f32 %v583, 0.2
  %v617 = vmul.f32 %v586, 0.2
  %v618 = vmul.f32 %v589, 0.2
  %v619 = vmul.f32 %v592, 0.2
  %v620 = vmul.f32 %v595, 0.2
  %v621 = vmul.f32 %v598, 0.2
  %v622 = vmul.f32 %v601, 0.2
  %v623 = vmul.f32 %v604, 0.2
  %v624 = vsel %vm606, %v580, %v615
  %v625 = vsel %vm607, %v583, %v616
  %v626 = vsel %vm608, %v586, %v617
  %v627 = vsel %vm609, %v589, %v618
  %v628 = vsel %vm610, %v592, %v619
  %v629 = vsel %vm611, %v595, %v620
  %v630 = vsel %vm612, %v598, %v621
  %v631 = vsel %vm613, %v601, %v622
  %v632 = vsel %vm614, %v604, %v623
  %634 = vset.pattern.permute.xlu0 0
  %635 = vperm.xlu0 %634, %v40
  %v636 = vpop.permute.xlu0 %635
  %v639 = vsel %vm534, %v18, 0
  %641 = vmatpush.msra.mxu0 0.0
  %642 = vmatpush.msra.mxu0 0.0
  %643 = vmatpush.msra.mxu0 0.0
  %644 = vmatpush.msra.mxu0 0.0
  %645 = vmatpush.msra.mxu0 0.0
  %646 = vmatpush.msra.mxu0 0.0
  %647 = vmatpush.msra.mxu0 0.0
  %648 = vmatpush.msra.mxu0 %v632
  %649 = vmatpush.msra.mxu0 %v631
  %650 = vmatpush.msra.mxu0 %v630
  %651 = vmatpush.msra.mxu0 %v629
  %652 = vmatpush.msra.mxu0 %v628
  %653 = vmatpush.msra.mxu0 %v627
  %654 = vmatpush.msra.mxu0 %v626
  %655 = vmatpush.msra.mxu0 %v625
  %656 = vmatpush.msra.mxu0 %v624
  %657 = vmatmul.f32.gmra.mxu0 %v639
  %v658 = vpop.f32.mrf.mxu0
  %v659 = vadd.f32 %v636, %v658
  %660 = vdwg.mxu0
  %vm661 = vcmp.ge.f32.partialorder %v659, 0.0
  %v662 = vmul.f32 %v659, 0.15
  %v663 = vsel %vm661, %v659, %v662
  %vm664 = vcmask 31744
  %v665 = vsel %vm664, %v663, 0.0
  %666 = vadd.xlane.f32.xlu0 %v665
  %v667 = vpop.xlane.xlu0 %666
  %v668 = vrcp.pop 4.0
  %v669 = vmul.f32 4.0, %v668
  %v670 = vsub.f32 1.0, %v669
  %v671 = vmul.f32 %v668, %v670
  %v672 = vadd.f32 %v668, %v671
  %vm673 = vweird.f32 %v668
  %v674 = vsel %vm673, %v668, %v672
  %v675 = vmul.f32 %v667, %v674
  %v676 = vmul.f32 %v19, %v675
  %vm677 = vcmask 64512
  %v678 = vsel %vm677, %v676, 0.0
  %v679 = vrot.slane %v678, 4
  %v680 = vadd.f32 %v678, %v679
  %v681 = vrot.slane %v680, 2
  %v682 = vadd.f32 %v680, %v681
  %v683 = vrot.slane %v682, 1
  %v684 = vadd.f32 %v682, %v683
  %v685 = vadd.f32 %v684, %v42
  %vm686 = vcmp.ge.f32.partialorder %v685, 0.0
  %v687 = vmul.f32 %v685, 0.1
  %v688 = vsel %vm686, %v685, %v687
  %v689 = vperm.slane %v688, 0
  %v690 = vmul.f32 %v20, %v689
  %v691 = vsel %vm677, %v690, 0.0
  %692 = vadd.xlane.f32.xlu0 %v691
  %v693 = vpop.xlane.xlu0 %692
  %v694 = vadd.f32 %v693, %v41
  %v695 = vxor.u32 %v694, 2147483648
  %v696 = vmul.f32 %v695, 1.442695
  %v697 = vpow.pop %v696
  %v698 = vadd.f32 %v697, 1.0
  %v699 = vrcp.pop %v698
  %v700 = vmul.f32 %v698, %v699
  %v701 = vsub.f32 1.0, %v700
  %v702 = vmul.f32 %v699, %v701
  %v703 = vadd.f32 %v699, %v702
  %vm704 = vweird.f32 %v698
  %vm705 = vweird.f32 %v699
  %vm706 = vmor %vm704, %vm705
  %v707 = vsel %vm706, %v699, %v703
  %v708 = vand.u32 2147483647, %v698
  %vm709 = vcmp.eq.f32.partialorder %v708, 8.507059e+37
  %v710 = vand.u32 %v698, 2147483648
  %v711 = vor.u32 1.1754944e-38, %v710
  %v712 = vsel %vm709, %v711, %v707
  %v713 = vmul.f32 1.0, %v712
  %715 = vset.pattern.permute.xlu0 0
  %716 = vperm.xlu0 %715, %v713
  %v717 = vpop.permute.xlu0 %716
  %v719 = vmul.f32 %v209, %v717
  %v720 = vmul.f32 %v210, %v717
  %721 = vst [vmem:[%s4] sm:$0xff] %v719
  %722 = vst [vmem:[%s4 + $0x8] sm:$0xff] %v720
  %724 = vrot.lane.b32.xlu0 %v663, 124
  %v725 = vpop.permute.xlu0 %724
  %v727 = vsel %vm664, %v725, 0.0
  %728 = vadd.xlane.f32.xlu0 %v727
  %v729 = vpop.xlane.xlu0 %728
  %v730 = vmul.f32 %v729, %v674
  %v731 = vmul.f32 %v19, %v730
  %v732 = vsel %vm677, %v731, 0.0
  %v733 = vrot.slane %v732, 4
  %v734 = vadd.f32 %v732, %v733
  %v735 = vrot.slane %v734, 2
  %v736 = vadd.f32 %v734, %v735
  %v737 = vrot.slane %v736, 1
  %v738 = vadd.f32 %v736, %v737
  %v739 = vadd.f32 %v738, %v42
  %vm740 = vcmp.ge.f32.partialorder %v739, 0.0
  %v741 = vmul.f32 %v739, 0.1
  %v742 = vsel %vm740, %v739, %v741
  %v743 = vperm.slane %v742, 0
  %v744 = vmul.f32 %v20, %v743
  %v745 = vsel %vm677, %v744, 0.0
  %746 = vadd.xlane.f32.xlu0 %v745
  %v747 = vpop.xlane.xlu0 %746
  %v748 = vadd.f32 %v747, %v41
  %v749 = vxor.u32 %v748, 2147483648
  %v750 = vmul.f32 %v749, 1.442695
  %v751 = vpow.pop %v750
  %v752 = vadd.f32 %v751, 1.0
  %v753 = vrcp.pop %v752
  %v754 = vmul.f32 %v752, %v753
  %v755 = vsub.f32 1.0, %v754
  %v756 = vmul.f32 %v753, %v755
  %v757 = vadd.f32 %v753, %v756
  %vm758 = vweird.f32 %v752
  %vm759 = vweird.f32 %v753
  %vm760 = vmor %vm758, %vm759
  %v761 = vsel %vm760, %v753, %v757
  %v762 = vand.u32 2147483647, %v752
  %vm763 = vcmp.eq.f32.partialorder %v762, 8.507059e+37
  %v764 = vand.u32 %v752, 2147483648
  %v765 = vor.u32 1.1754944e-38, %v764
  %v766 = vsel %vm763, %v765, %v761
  %v767 = vmul.f32 1.0, %v766
  %769 = vset.pattern.permute.xlu0 0
  %770 = vperm.xlu0 %769, %v767
  %v771 = vpop.permute.xlu0 %770
  %v773 = vmul.f32 %v211, %v771
  %v774 = vmul.f32 %v212, %v771
  %s775 = scalar_lea.vmem %s4, 16
  %776 = vst [vmem:[%s775] sm:$0xff] %v773
  %777 = vst [vmem:[%s775 + $0x8] sm:$0xff] %v774
  // Predicated region
  $region18: #{cam_block.1} parent=0 // pred_check
    _
  $region19: #{cam_block.1} parent=0 // pred_check_branch
    %779 = sbr.rel (0) target = $region21
  $region20: #{cam_block.1} parent=0 // pred_region
    _
  $region21: #{cam_block.1} parent=0 // pred_fallthru
    _
  // Predicated region
  $region22: #{cam_block.1} parent=0 // pred_check
    _
  $region23: #{cam_block.1} parent=0 // pred_check_branch
    %781 = sbr.rel (0) target = $region25
  $region24: #{cam_block.1} parent=0 // pred_region
    _
  $region25: #{cam_block.1} parent=0 // pred_fallthru
    _

</llo_original>
